<compile_context>
chip_gen: v7x
topology: tpu7x:2x2x1
jax: 0.10.0
libtpu: 0.0.40
codegen_flags: <defaults>
</compile_context>

<pallas_src>
import functools

import jax
import jax.numpy as jnp
from jax.experimental import pallas as pl
from jax.experimental.pallas import tpu as pltpu


IN_DIM = 28 * 28 * 1     # 784 — kernel K of the first matmul (no padding)
OUT_LANES = 128          # lane-dense output (n_classes padded up to 128)
MAX_TILE_B = 1024        # batch tile upper bound (fits VMEM on v5e/v6e/v7x)


# ----------------------------- Pallas kernel -------------------------------

def _mlp_kernel(x_ref,
                w0_ref, b0_ref,
                w1_ref, b1_ref, g1_ref, be1_ref,
                w2_ref, b2_ref, g2_ref, be2_ref,
                wo_ref, bo_ref,
                o_ref,
                *, inv_ln1, inv_ln2):
    # x arrives as f32 from HBM; cast to bf16 only for the MXU operands.
    x = x_ref[...].astype(jnp.bfloat16)                         # (TILE_B, 784)
    h = jnp.dot(x, w0_ref[...], preferred_element_type=jnp.float32) + b0_ref[...]

    def linear_ln_relu(h_in, w, b, gamma, beta, inv_width):
        z = jnp.dot(h_in.astype(jnp.bfloat16), w,
                    preferred_element_type=jnp.float32) + b
        # LayerNorm with compile-time reciprocal of the width (no VALU divide).
        mu = jnp.sum(z, axis=-1, keepdims=True) * inv_width
        d = z - mu
        var = jnp.sum(d * d, axis=-1, keepdims=True) * inv_width   # biased var
        zn = d * jax.lax.rsqrt(var + 1e-5)
        return jnp.maximum(zn * gamma + beta, 0.0)

    h = linear_ln_relu(h, w1_ref[...], b1_ref[...], g1_ref[...], be1_ref[...], inv_ln1)
    h = linear_ln_relu(h, w2_ref[...], b2_ref[...], g2_ref[...], be2_ref[...], inv_ln2)

    out = jnp.dot(h.astype(jnp.bfloat16), wo_ref[...],
                  preferred_element_type=jnp.float32) + bo_ref[...]
    o_ref[...] = out.astype(o_ref.dtype)                        # (TILE_B, 128) lane-dense


# ------------------------------ wrapper -------------------------------------

def prepare_kernel_params(params):
    """One-time cast/pad of f32 (in, out) params into the kernel layout.

    Call once (outside the per-forward path): weights -> bf16, output layer
    padded to 128 lanes with zeros. Biases/LN affine params stay f32.
    """
    kp = {}
    kp["w0"] = params["w0"].astype(jnp.bfloat16)                 # (784, 128)
    kp["b0"] = params["b0"]
    kp["w1"] = params["w1"].astype(jnp.bfloat16)                 # (128, 64)
    kp["w2"] = params["w2"].astype(jnp.bfloat16)                 # (64, 32)
    for name in ("b1", "g1", "be1", "b2", "g2", "be2"):
        kp[name] = params[name]
    n_classes = params["wo"].shape[1]
    kp["wo"] = jnp.pad(params["wo"].astype(jnp.bfloat16),
                       ((0, 0), (0, OUT_LANES - n_classes)))     # (32, 128)
    kp["bo"] = jnp.pad(params["bo"], ((0, 0), (0, OUT_LANES - n_classes)))
    return kp


def _round_up(n, m):
    return ((n + m - 1) // m) * m


def _choose_tile_b(B, max_tile=MAX_TILE_B):
    """Large tile for roofline, but keep >=2 grid steps (v7x dual-TC) when B > 8."""
    if B <= 8:
        return 8
    half = _round_up(pl.cdiv(B, 2), 8)
    return min(max_tile, half)


@functools.partial(jax.jit, static_argnames=("n_classes",))
def cnn_forward(x_nchw, kernel_params, *, n_classes=10):
    """Forward pass of CNN (mnist, 'LAYER' norm) via one batch-tiled Pallas kernel."""
    kp = kernel_params
    B = x_nchw.shape[0]
    ln1_width = kp["w1"].shape[1]   # 64
    ln2_width = kp["w2"].shape[1]   # 32

    x_flat = x_nchw.reshape(B, -1)                               # x.view(-1, 784), f32
    assert x_flat.shape[1] == IN_DIM

    tile_b = _choose_tile_b(B)
    b_pad = pl.cdiv(B, tile_b) * tile_b
    # Skip the HBM pad copy entirely when B is already tile-aligned.
    x_in = x_flat if b_pad == B else jnp.pad(x_flat, ((0, b_pad - B), (0, 0)))

    args = (
        x_in,
        kp["w0"], kp["b0"],
        kp["w1"], kp["b1"], kp["g1"], kp["be1"],
        kp["w2"], kp["b2"], kp["g2"], kp["be2"],
        kp["wo"], kp["bo"],
    )

    kernel = functools.partial(_mlp_kernel,
                               inv_ln1=1.0 / ln1_width,
                               inv_ln2=1.0 / ln2_width)

    grid = (b_pad // tile_b,)
    # x / out move per batch tile; weights/biases use constant index maps so
    # Pallas fetches them once and keeps them VMEM-resident across iterations.
    in_specs = ([pl.BlockSpec((tile_b, IN_DIM), lambda i: (i, 0))]
                + [pl.BlockSpec(a.shape, lambda i: (0, 0)) for a in args[1:]])
    out_spec = pl.BlockSpec((tile_b, OUT_LANES), lambda i: (i, 0))

    h0, h1, h2 = kp["w0"].shape[1], kp["w1"].shape[1], kp["w2"].shape[1]
    cost = pl.CostEstimate(
        flops=2 * b_pad * (IN_DIM * h0 + h0 * h1 + h1 * h2 + h2 * OUT_LANES),
        transcendentals=2 * b_pad,                               # two rsqrt per row
        bytes_accessed=b_pad * (IN_DIM * 4 + OUT_LANES * 4)
        + 2 * (IN_DIM * h0 + h0 * h1 + h1 * h2 + h2 * OUT_LANES),
    )

    out_padded = pl.pallas_call(
        kernel,
        grid=grid,
        in_specs=in_specs,
        out_specs=out_spec,
        out_shape=jax.ShapeDtypeStruct((b_pad, OUT_LANES), jnp.float32),
        compiler_params=pltpu.CompilerParams(
            dimension_semantics=("parallel",)),   # batch tiles shard across TCs on v7x
        cost_estimate=cost,
    )(*args)

    return out_padded[:B, :n_classes]


# --------------------------- parameter creation -----------------------------

def init_params(key, in_dim, hidden_widths, n_classes):
    """Deterministic PyTorch-Linear-style uniform init. Weights stored (in, out), f32."""
    dims = [in_dim] + list(hidden_widths) + [n_classes]
    keys = jax.random.split(key, 2 * (len(dims) - 1))
    params = {}

    def linear(kw, kb, fan_in, fan_out):
        bound = 1.0 / jnp.sqrt(jnp.float32(fan_in))
        w = jax.random.uniform(kw, (fan_in, fan_out), jnp.float32, -bound, bound)
        b = jax.random.uniform(kb, (1, fan_out), jnp.float32, -bound, bound)
        return w, b

    params["w0"], params["b0"] = linear(keys[0], keys[1], dims[0], dims[1])
    params["w1"], params["b1"] = linear(keys[2], keys[3], dims[1], dims[2])
    params["w2"], params["b2"] = linear(keys[4], keys[5], dims[2], dims[3])
    params["wo"], params["bo"] = linear(keys[6], keys[7], dims[3], dims[4])
    # LayerNorm affine params (PyTorch init: gamma=1, beta=0)
    params["g1"] = jnp.ones((1, dims[2]), jnp.float32)
    params["be1"] = jnp.zeros((1, dims[2]), jnp.float32)
    params["g2"] = jnp.ones((1, dims[3]), jnp.float32)
    params["be2"] = jnp.zeros((1, dims[3]), jnp.float32)
    return params


# ------------------------------ reference -----------------------------------

def reference_forward(x_nchw, params, matmul_dtype=jnp.float32):
    """Pure-JAX reference. matmul_dtype=bf16 mirrors the kernel's MXU numerics."""
    x = x_nchw.reshape(x_nchw.shape[0], -1)

    def mm(a, w):
        return jnp.dot(a.astype(matmul_dtype), w.astype(matmul_dtype),
                       preferred_element_type=jnp.float32)

    h = mm(x, params["w0"]) + params["b0"]

    def ln_relu(z, g, be):
        mu = jnp.mean(z, axis=-1, keepdims=True)
        var = jnp.mean((z - mu) ** 2, axis=-1, keepdims=True)
        return jnp.maximum((z - mu) / jnp.sqrt(var + 1e-5) * g + be, 0.0)

    h = ln_relu(mm(h, params["w1"]) + params["b1"], params["g1"], params["be1"])
    h = ln_relu(mm(h, params["w2"]) + params["b2"], params["g2"], params["be2"])
    return mm(h, params["wo"]) + params["bo"]


# --------------------------------- main --------------------------------------

if __name__ == "__main__":
    # CNN(N_CLASSES=10, DATASET_NAME='mnist', HIDDEN_LAYER_WIDTHS=[128, 64, 32],
    #     random_seed=0, init_type=..., normalization_type='LAYER')
    N_CLASSES = 10
    HIDDEN_LAYER_WIDTHS = [128, 64, 32]

    key = jax.random.PRNGKey(0)
    kx, kp_key = jax.random.split(key)

    batch = 2
    x = jax.random.normal(kx, (batch, 1, 28, 28), jnp.float32)  # NCHW, like PyTorch
    params = init_params(kp_key, IN_DIM, HIDDEN_LAYER_WIDTHS, N_CLASSES)

    # Hoisted out of the per-call path: cast/pad weights once.
    kernel_params = jax.tree_util.tree_map(jax.block_until_ready,
                                           prepare_kernel_params(params))

    out = jax.block_until_ready(cnn_forward(x, kernel_params, n_classes=N_CLASSES))

    ref_matched = reference_forward(x, params, matmul_dtype=jnp.bfloat16)  # kernel numerics
    ref_f32 = reference_forward(x, params, matmul_dtype=jnp.float32)       # module numerics

    assert out.shape == (batch, N_CLASSES)
    assert jnp.allclose(out, ref_matched, atol=2e-3, rtol=2e-3), "mismatch vs bf16-matched reference"
    assert jnp.allclose(out, ref_f32, atol=1e-1, rtol=1e-1), "mismatch vs f32 reference"

    print("KERNEL_OK")
</pallas_src>

<mosaic_0001>
module attributes {stable_mosaic.version = 11 : i64} {
  func.func @_mlp_kernel(%arg0: i32, %arg1: memref<8x784xf32, #tpu.memory_space<vmem>>, %arg2: memref<784x128xbf16, #tpu.memory_space<vmem>>, %arg3: memref<1x128xf32, #tpu.memory_space<vmem>>, %arg4: memref<128x64xbf16, #tpu.memory_space<vmem>>, %arg5: memref<1x64xf32, #tpu.memory_space<vmem>>, %arg6: memref<1x64xf32, #tpu.memory_space<vmem>>, %arg7: memref<1x64xf32, #tpu.memory_space<vmem>>, %arg8: memref<64x32xbf16, #tpu.memory_space<vmem>>, %arg9: memref<1x32xf32, #tpu.memory_space<vmem>>, %arg10: memref<1x32xf32, #tpu.memory_space<vmem>>, %arg11: memref<1x32xf32, #tpu.memory_space<vmem>>, %arg12: memref<32x128xbf16, #tpu.memory_space<vmem>>, %arg13: memref<1x128xf32, #tpu.memory_space<vmem>>, %arg14: memref<8x128xf32, #tpu.memory_space<vmem>>) attributes {dimension_semantics = [#tpu.dimension_semantics<parallel>], iteration_bounds = array<i64: 1>, scalar_prefetch = 0 : i64, scratch_operands = 0 : i64, tpu.core_type = #tpu.core_type<tc>, window_params = [{transform_indices = @transform_0, window_bounds = array<i64: 8, 784>}, {pipeline_mode = #tpu.pipeline_mode<synchronous>, transform_indices = @transform_1, window_bounds = array<i64: 784, 128>}, {pipeline_mode = #tpu.pipeline_mode<synchronous>, transform_indices = @transform_2, window_bounds = array<i64: 1, 128>}, {pipeline_mode = #tpu.pipeline_mode<synchronous>, transform_indices = @transform_3, window_bounds = array<i64: 128, 64>}, {pipeline_mode = #tpu.pipeline_mode<synchronous>, transform_indices = @transform_4, window_bounds = array<i64: 1, 64>}, {pipeline_mode = #tpu.pipeline_mode<synchronous>, transform_indices = @transform_5, window_bounds = array<i64: 1, 64>}, {pipeline_mode = #tpu.pipeline_mode<synchronous>, transform_indices = @transform_6, window_bounds = array<i64: 1, 64>}, {pipeline_mode = #tpu.pipeline_mode<synchronous>, transform_indices = @transform_7, window_bounds = array<i64: 64, 32>}, {pipeline_mode = #tpu.pipeline_mode<synchronous>, transform_indices = @transform_8, window_bounds = array<i64: 1, 32>}, {pipeline_mode = #tpu.pipeline_mode<synchronous>, transform_indices = @transform_9, window_bounds = array<i64: 1, 32>}, {pipeline_mode = #tpu.pipeline_mode<synchronous>, transform_indices = @transform_10, window_bounds = array<i64: 1, 32>}, {pipeline_mode = #tpu.pipeline_mode<synchronous>, transform_indices = @transform_11, window_bounds = array<i64: 32, 128>}, {pipeline_mode = #tpu.pipeline_mode<synchronous>, transform_indices = @transform_12, window_bounds = array<i64: 1, 128>}, {transform_indices = @transform_13, window_bounds = array<i64: 8, 128>}]} {
    %c0 = arith.constant 0 : index
    %c0_0 = arith.constant 0 : index
    %0 = vector.load %arg1[%c0, %c0_0] : memref<8x784xf32, #tpu.memory_space<vmem>>, vector<8x784xf32>
    %1 = arith.truncf %0 : vector<8x784xf32> to vector<8x784xbf16>
    %c0_1 = arith.constant 0 : index
    %c0_2 = arith.constant 0 : index
    %2 = vector.load %arg2[%c0_1, %c0_2] : memref<784x128xbf16, #tpu.memory_space<vmem>>, vector<784x128xbf16>
    %cst = arith.constant dense<0.000000e+00> : vector<8x128xf32>
    %3 = tpu.matmul %1, %2, %cst {dimension_numbers = #tpu.dot_dimension_numbers<[1], [0], [0], [1], [0, 0, 1, 1], [], []>} : vector<8x784xbf16>, vector<784x128xbf16>, vector<8x128xf32> -> vector<8x128xf32>
    %c0_3 = arith.constant 0 : index
    %c0_4 = arith.constant 0 : index
    %4 = vector.load %arg3[%c0_3, %c0_4] : memref<1x128xf32, #tpu.memory_space<vmem>>, vector<1x128xf32>
    %5 = vector.broadcast %4 : vector<1x128xf32> to vector<8x128xf32>
    %6 = arith.addf %3, %5 : vector<8x128xf32>
    %c0_5 = arith.constant 0 : index
    %c0_6 = arith.constant 0 : index
    %7 = vector.load %arg4[%c0_5, %c0_6] : memref<128x64xbf16, #tpu.memory_space<vmem>>, vector<128x64xbf16>
    %c0_7 = arith.constant 0 : index
    %c0_8 = arith.constant 0 : index
    %8 = vector.load %arg5[%c0_7, %c0_8] : memref<1x64xf32, #tpu.memory_space<vmem>>, vector<1x64xf32>
    %c0_9 = arith.constant 0 : index
    %c0_10 = arith.constant 0 : index
    %9 = vector.load %arg6[%c0_9, %c0_10] : memref<1x64xf32, #tpu.memory_space<vmem>>, vector<1x64xf32>
    %c0_11 = arith.constant 0 : index
    %c0_12 = arith.constant 0 : index
    %10 = vector.load %arg7[%c0_11, %c0_12] : memref<1x64xf32, #tpu.memory_space<vmem>>, vector<1x64xf32>
    %11 = arith.truncf %6 : vector<8x128xf32> to vector<8x128xbf16>
    %cst_13 = arith.constant dense<0.000000e+00> : vector<8x64xf32>
    %12 = tpu.matmul %11, %7, %cst_13 {dimension_numbers = #tpu.dot_dimension_numbers<[1], [0], [0], [1], [0, 0, 1, 1], [], []>} : vector<8x128xbf16>, vector<128x64xbf16>, vector<8x64xf32> -> vector<8x64xf32>
    %13 = vector.broadcast %8 : vector<1x64xf32> to vector<8x64xf32>
    %14 = arith.addf %12, %13 : vector<8x64xf32>
    %cst_14 = arith.constant dense<0.000000e+00> : vector<8xf32>
    %15 = vector.multi_reduction <add>, %14, %cst_14 [1] : vector<8x64xf32> to vector<8xf32>
    %16 = vector.shape_cast %15 : vector<8xf32> to vector<8x1xf32>
    %cst_15 = arith.constant 1.562500e-02 : f32
    %17 = vector.broadcast %cst_15 : f32 to vector<8x1xf32>
    %18 = arith.mulf %16, %17 : vector<8x1xf32>
    %19 = vector.broadcast %18 : vector<8x1xf32> to vector<8x64xf32>
    %20 = arith.subf %14, %19 : vector<8x64xf32>
    %21 = arith.mulf %20, %20 : vector<8x64xf32>
    %cst_16 = arith.constant dense<0.000000e+00> : vector<8xf32>
    %22 = vector.multi_reduction <add>, %21, %cst_16 [1] : vector<8x64xf32> to vector<8xf32>
    %23 = vector.shape_cast %22 : vector<8xf32> to vector<8x1xf32>
    %cst_17 = arith.constant 1.562500e-02 : f32
    %24 = vector.broadcast %cst_17 : f32 to vector<8x1xf32>
    %25 = arith.mulf %23, %24 : vector<8x1xf32>
    %cst_18 = arith.constant 9.99999974E-6 : f32
    %26 = vector.broadcast %cst_18 : f32 to vector<8x1xf32>
    %27 = arith.addf %25, %26 : vector<8x1xf32>
    %28 = math.rsqrt %27 : vector<8x1xf32>
    %29 = vector.broadcast %28 : vector<8x1xf32> to vector<8x64xf32>
    %30 = arith.mulf %20, %29 : vector<8x64xf32>
    %31 = vector.broadcast %9 : vector<1x64xf32> to vector<8x64xf32>
    %32 = arith.mulf %30, %31 : vector<8x64xf32>
    %33 = vector.broadcast %10 : vector<1x64xf32> to vector<8x64xf32>
    %34 = arith.addf %32, %33 : vector<8x64xf32>
    %cst_19 = arith.constant 0.000000e+00 : f32
    %35 = vector.broadcast %cst_19 : f32 to vector<8x64xf32>
    %36 = arith.maximumf %34, %35 : vector<8x64xf32>
    %c0_20 = arith.constant 0 : index
    %c0_21 = arith.constant 0 : index
    %37 = vector.load %arg8[%c0_20, %c0_21] : memref<64x32xbf16, #tpu.memory_space<vmem>>, vector<64x32xbf16>
    %c0_22 = arith.constant 0 : index
    %c0_23 = arith.constant 0 : index
    %38 = vector.load %arg9[%c0_22, %c0_23] : memref<1x32xf32, #tpu.memory_space<vmem>>, vector<1x32xf32>
    %c0_24 = arith.constant 0 : index
    %c0_25 = arith.constant 0 : index
    %39 = vector.load %arg10[%c0_24, %c0_25] : memref<1x32xf32, #tpu.memory_space<vmem>>, vector<1x32xf32>
    %c0_26 = arith.constant 0 : index
    %c0_27 = arith.constant 0 : index
    %40 = vector.load %arg11[%c0_26, %c0_27] : memref<1x32xf32, #tpu.memory_space<vmem>>, vector<1x32xf32>
    %41 = arith.truncf %36 : vector<8x64xf32> to vector<8x64xbf16>
    %cst_28 = arith.constant dense<0.000000e+00> : vector<8x32xf32>
    %42 = tpu.matmul %41, %37, %cst_28 {dimension_numbers = #tpu.dot_dimension_numbers<[1], [0], [0], [1], [0, 0, 1, 1], [], []>} : vector<8x64xbf16>, vector<64x32xbf16>, vector<8x32xf32> -> vector<8x32xf32>
    %43 = vector.broadcast %38 : vector<1x32xf32> to vector<8x32xf32>
    %44 = arith.addf %42, %43 : vector<8x32xf32>
    %cst_29 = arith.constant dense<0.000000e+00> : vector<8xf32>
    %45 = vector.multi_reduction <add>, %44, %cst_29 [1] : vector<8x32xf32> to vector<8xf32>
    %46 = vector.shape_cast %45 : vector<8xf32> to vector<8x1xf32>
    %cst_30 = arith.constant 3.125000e-02 : f32
    %47 = vector.broadcast %cst_30 : f32 to vector<8x1xf32>
    %48 = arith.mulf %46, %47 : vector<8x1xf32>
    %49 = vector.broadcast %48 : vector<8x1xf32> to vector<8x32xf32>
    %50 = arith.subf %44, %49 : vector<8x32xf32>
    %51 = arith.mulf %50, %50 : vector<8x32xf32>
    %cst_31 = arith.constant dense<0.000000e+00> : vector<8xf32>
    %52 = vector.multi_reduction <add>, %51, %cst_31 [1] : vector<8x32xf32> to vector<8xf32>
    %53 = vector.shape_cast %52 : vector<8xf32> to vector<8x1xf32>
    %cst_32 = arith.constant 3.125000e-02 : f32
    %54 = vector.broadcast %cst_32 : f32 to vector<8x1xf32>
    %55 = arith.mulf %53, %54 : vector<8x1xf32>
    %cst_33 = arith.constant 9.99999974E-6 : f32
    %56 = vector.broadcast %cst_33 : f32 to vector<8x1xf32>
    %57 = arith.addf %55, %56 : vector<8x1xf32>
    %58 = math.rsqrt %57 : vector<8x1xf32>
    %59 = vector.broadcast %58 : vector<8x1xf32> to vector<8x32xf32>
    %60 = arith.mulf %50, %59 : vector<8x32xf32>
    %61 = vector.broadcast %39 : vector<1x32xf32> to vector<8x32xf32>
    %62 = arith.mulf %60, %61 : vector<8x32xf32>
    %63 = vector.broadcast %40 : vector<1x32xf32> to vector<8x32xf32>
    %64 = arith.addf %62, %63 : vector<8x32xf32>
    %cst_34 = arith.constant 0.000000e+00 : f32
    %65 = vector.broadcast %cst_34 : f32 to vector<8x32xf32>
    %66 = arith.maximumf %64, %65 : vector<8x32xf32>
    %67 = arith.truncf %66 : vector<8x32xf32> to vector<8x32xbf16>
    %c0_35 = arith.constant 0 : index
    %c0_36 = arith.constant 0 : index
    %68 = vector.load %arg12[%c0_35, %c0_36] : memref<32x128xbf16, #tpu.memory_space<vmem>>, vector<32x128xbf16>
    %cst_37 = arith.constant dense<0.000000e+00> : vector<8x128xf32>
    %69 = tpu.matmul %67, %68, %cst_37 {dimension_numbers = #tpu.dot_dimension_numbers<[1], [0], [0], [1], [0, 0, 1, 1], [], []>} : vector<8x32xbf16>, vector<32x128xbf16>, vector<8x128xf32> -> vector<8x128xf32>
    %c0_38 = arith.constant 0 : index
    %c0_39 = arith.constant 0 : index
    %70 = vector.load %arg13[%c0_38, %c0_39] : memref<1x128xf32, #tpu.memory_space<vmem>>, vector<1x128xf32>
    %71 = vector.broadcast %70 : vector<1x128xf32> to vector<8x128xf32>
    %72 = arith.addf %69, %71 : vector<8x128xf32>
    %c0_40 = arith.constant 0 : index
    %c0_41 = arith.constant 0 : index
    %73 = vector.load %arg14[%c0_40, %c0_41] : memref<8x128xf32, #tpu.memory_space<vmem>>, vector<8x128xf32>
    tpu.vector_store %arg14[%c0_40, %c0_41], %72 {strides = array<i32>} : memref<8x128xf32, #tpu.memory_space<vmem>>, vector<8x128xf32>,
    return
  }
  func.func @transform_0(%arg0: i32) -> (i32, i32) {
    %c0_i32 = arith.constant 0 : i32
    %c0_i32_0 = arith.constant 0 : i32
    return %arg0, %c0_i32 : i32, i32
  }
  func.func @transform_1(%arg0: i32) -> (i32, i32) {
    %c0_i32 = arith.constant 0 : i32
    %c0_i32_0 = arith.constant 0 : i32
    %c0_i32_1 = arith.constant 0 : i32
    return %c0_i32, %c0_i32_0 : i32, i32
  }
  func.func @transform_2(%arg0: i32) -> (i32, i32) {
    %c0_i32 = arith.constant 0 : i32
    %c0_i32_0 = arith.constant 0 : i32
    %c0_i32_1 = arith.constant 0 : i32
    return %c0_i32, %c0_i32_0 : i32, i32
  }
  func.func @transform_3(%arg0: i32) -> (i32, i32) {
    %c0_i32 = arith.constant 0 : i32
    %c0_i32_0 = arith.constant 0 : i32
    %c0_i32_1 = arith.constant 0 : i32
    return %c0_i32, %c0_i32_0 : i32, i32
  }
  func.func @transform_4(%arg0: i32) -> (i32, i32) {
    %c0_i32 = arith.constant 0 : i32
    %c0_i32_0 = arith.constant 0 : i32
    %c0_i32_1 = arith.constant 0 : i32
    return %c0_i32, %c0_i32_0 : i32, i32
  }
  func.func @transform_5(%arg0: i32) -> (i32, i32) {
    %c0_i32 = arith.constant 0 : i32
    %c0_i32_0 = arith.constant 0 : i32
    %c0_i32_1 = arith.constant 0 : i32
    return %c0_i32, %c0_i32_0 : i32, i32
  }
  func.func @transform_6(%arg0: i32) -> (i32, i32) {
    %c0_i32 = arith.constant 0 : i32
    %c0_i32_0 = arith.constant 0 : i32
    %c0_i32_1 = arith.constant 0 : i32
    return %c0_i32, %c0_i32_0 : i32, i32
  }
  func.func @transform_7(%arg0: i32) -> (i32, i32) {
    %c0_i32 = arith.constant 0 : i32
    %c0_i32_0 = arith.constant 0 : i32
    %c0_i32_1 = arith.constant 0 : i32
    return %c0_i32, %c0_i32_0 : i32, i32
  }
  func.func @transform_8(%arg0: i32) -> (i32, i32) {
    %c0_i32 = arith.constant 0 : i32
    %c0_i32_0 = arith.constant 0 : i32
    %c0_i32_1 = arith.constant 0 : i32
    return %c0_i32, %c0_i32_0 : i32, i32
  }
  func.func @transform_9(%arg0: i32) -> (i32, i32) {
    %c0_i32 = arith.constant 0 : i32
    %c0_i32_0 = arith.constant 0 : i32
    %c0_i32_1 = arith.constant 0 : i32
    return %c0_i32, %c0_i32_0 : i32, i32
  }
  func.func @transform_10(%arg0: i32) -> (i32, i32) {
    %c0_i32 = arith.constant 0 : i32
    %c0_i32_0 = arith.constant 0 : i32
    %c0_i32_1 = arith.constant 0 : i32
    return %c0_i32, %c0_i32_0 : i32, i32
  }
  func.func @transform_11(%arg0: i32) -> (i32, i32) {
    %c0_i32 = arith.constant 0 : i32
    %c0_i32_0 = arith.constant 0 : i32
    %c0_i32_1 = arith.constant 0 : i32
    return %c0_i32, %c0_i32_0 : i32, i32
  }
  func.func @transform_12(%arg0: i32) -> (i32, i32) {
    %c0_i32 = arith.constant 0 : i32
    %c0_i32_0 = arith.constant 0 : i32
    %c0_i32_1 = arith.constant 0 : i32
    return %c0_i32, %c0_i32_0 : i32, i32
  }
  func.func @transform_13(%arg0: i32) -> (i32, i32) {
    %c0_i32 = arith.constant 0 : i32
    %c0_i32_0 = arith.constant 0 : i32
    return %arg0, %c0_i32 : i32, i32
  }
}

</mosaic_0001>

<llo_original>
// kernel: cnn_forward.1
$region0: #{cnn_forward.1}
  #allocation0 [shape = 'u32[]', space=smem, size = 0x4, offset = 0x4, fixed_abs, tag = 'smem constant byte address 0x4 - core index']
  #allocation1 [shape = 'u32[144,128]{1,0:T(1,128)}', space=vmem, size = 0x12000, scoped, tag = 'internal scratch']
  %s0 = inlined_call_operand.vmem [shape: f32[8,784], index: 0, kind: input, shape index: {}]
  %s1 = inlined_call_operand.vmem [shape: bf16[784,128], index: 1, kind: input, shape index: {}]
  %s2 = inlined_call_operand.vmem [shape: f32[1,128], index: 2, kind: input, shape index: {}]
  %s3 = inlined_call_operand.vmem [shape: bf16[128,64], index: 3, kind: input, shape index: {}]
  %s4 = inlined_call_operand.vmem [shape: f32[1,64], index: 4, kind: input, shape index: {}]
  %s5 = inlined_call_operand.vmem [shape: f32[1,64], index: 5, kind: input, shape index: {}]
  %s6 = inlined_call_operand.hbm [shape: f32[1,64], index: 6, kind: input, shape index: {}]
  %s7 = inlined_call_operand.vmem [shape: bf16[64,32], index: 7, kind: input, shape index: {}]
  %s8 = inlined_call_operand.hbm [shape: f32[1,32], index: 8, kind: input, shape index: {}]
  %s9 = inlined_call_operand.hbm [shape: f32[1,32], index: 9, kind: input, shape index: {}]
  %s10 = inlined_call_operand.hbm [shape: f32[1,32], index: 10, kind: input, shape index: {}]
  %s11 = inlined_call_operand.vmem [shape: bf16[32,128], index: 11, kind: input, shape index: {}]
  %s12 = inlined_call_operand.hbm [shape: f32[1,128], index: 12, kind: input, shape index: {}]
  %s13 = inlined_call_operand.vmem [shape: f32[8,128], index: 13, kind: output, shape index: {}]
  %s14 = sld [smem:[#allocation0]]
  $region82: #{cnn_forward.1} parent=0
    _
  %s16 = ssub.s32 1, %s14
  %s17 = scalar_select 0, %s16, %s14
  $region1: #{cnn_forward.1} parent=0
    #allocation2 [shape = 'u8[512]{0}', space=vmem, size = 0x400, scoped, tag = 'input window, operand 6, single buffered']
    #allocation3 [shape = 's32[1]{0}', space=sflag, size = 0x4, scoped, tag = 'scoped memory for cnn_forward.1']
    #allocation4 [shape = 'u8[512]{0}', space=vmem, size = 0x400, scoped, tag = 'input window, operand 8, single buffered']
    #allocation5 [shape = 's32[1]{0}', space=sflag, size = 0x4, scoped, tag = 'scoped memory for cnn_forward.1']
    #allocation6 [shape = 'u8[512]{0}', space=vmem, size = 0x400, scoped, tag = 'input window, operand 9, single buffered']
    #allocation7 [shape = 'u8[512]{0}', space=vmem, size = 0x400, scoped, tag = 'input window, operand 10, single buffered']
    #allocation8 [shape = 's32[1]{0}', space=sflag, size = 0x4, scoped, tag = 'scoped memory for cnn_forward.1']
    #allocation9 [shape = 'u8[512]{0}', space=vmem, size = 0x400, scoped, tag = 'input window, operand 12, single buffered']
    %18 = vsyncpa [#allocation3], 0
    %19 = vsyncpa [#allocation5], 0
    %20 = vsyncpa [#allocation8], 0
    // Predicated region
    $region2: #{cnn_forward.1} parent=1 // pred_check
      _
    $region3: #{cnn_forward.1} parent=1 // pred_check_branch
      %22 = sbr.rel (0) target = $region5
    $region4: #{cnn_forward.1} parent=1 // pred_region
      _
    $region5: #{cnn_forward.1} parent=1 // pred_fallthru
      _
    // Predicated region
    $region6: #{cnn_forward.1} parent=1 // pred_check
      _
    $region7: #{cnn_forward.1} parent=1 // pred_check_branch
      %24 = sbr.rel (0) target = $region9
    $region8: #{cnn_forward.1} parent=1 // pred_region
      _
    $region9: #{cnn_forward.1} parent=1 // pred_fallthru
      _
    // Predicated region
    $region10: #{cnn_forward.1} parent=1 // pred_check
      _
    $region11: #{cnn_forward.1} parent=1 // pred_check_branch
      %26 = sbr.rel (0) target = $region13
    $region12: #{cnn_forward.1} parent=1 // pred_region
      _
    $region13: #{cnn_forward.1} parent=1 // pred_fallthru
      _
    // Predicated region
    $region14: #{cnn_forward.1} parent=1 // pred_check
      _
    $region15: #{cnn_forward.1} parent=1 // pred_check_branch
      %28 = sbr.rel (0) target = $region17
    $region16: #{cnn_forward.1} parent=1 // pred_region
      _
    $region17: #{cnn_forward.1} parent=1 // pred_fallthru
      _
    // Predicated region
    $region18: #{cnn_forward.1} parent=1 // pred_check
      _
    $region19: #{cnn_forward.1} parent=1 // pred_check_branch
      %30 = sbr.rel (0) target = $region21
    $region20: #{cnn_forward.1} parent=1 // pred_region
      _
    $region21: #{cnn_forward.1} parent=1 // pred_fallthru
      _
    // Predicated region
    $region22: #{cnn_forward.1} parent=1 // pred_check
      _
    $region23: #{cnn_forward.1} parent=1 // pred_check_branch
      %32 = sbr.rel (0) target = $region25
    $region24: #{cnn_forward.1} parent=1 // pred_region
      _
    $region25: #{cnn_forward.1} parent=1 // pred_fallthru
      _
    // Predicated region
    $region26: #{cnn_forward.1} parent=1 // pred_check
      _
    $region27: #{cnn_forward.1} parent=1 // pred_check_branch
      %34 = sbr.rel (0) target = $region29
    $region28: #{cnn_forward.1} parent=1 // pred_region
      %s36 = ssub.s32 16, 16
      %37 = vsyncadd [#allocation3], %s36
      %s39 = sshll.u32 [#allocation2], 4
      %s40 = int_to_ptr.vmem [resolvable:$true] %s39
      %42 = dma.hbm_to_vmem [thread:$0]  %s6, 16, %s40, [#allocation3]
    $region29: #{cnn_forward.1} parent=1 // pred_fallthru
      _
    // Predicated region
    $region30: #{cnn_forward.1} parent=1 // pred_check
      _
    $region31: #{cnn_forward.1} parent=1 // pred_check_branch
      %44 = sbr.rel (0) target = $region33
    $region32: #{cnn_forward.1} parent=1 // pred_region
      _
    $region33: #{cnn_forward.1} parent=1 // pred_fallthru
      _
    // Predicated region
    $region34: #{cnn_forward.1} parent=1 // pred_check
      _
    $region35: #{cnn_forward.1} parent=1 // pred_check_branch
      %46 = sbr.rel (0) target = $region37
    $region36: #{cnn_forward.1} parent=1 // pred_region
      %s48 = ssub.s32 16, 16
      %49 = vsyncadd [#allocation5], %s48
      %s51 = sshll.u32 [#allocation4], 4
      %s52 = int_to_ptr.vmem [resolvable:$true] %s51
      %54 = dma.hbm_to_vmem [thread:$0]  %s8, 16, %s52, [#allocation5]
    $region37: #{cnn_forward.1} parent=1 // pred_fallthru
      _
    // Predicated region
    $region38: #{cnn_forward.1} parent=1 // pred_check
      _
    $region39: #{cnn_forward.1} parent=1 // pred_check_branch
      %56 = sbr.rel (0) target = $region41
    $region40: #{cnn_forward.1} parent=1 // pred_region
      %s58 = ssub.s32 16, 16
      %59 = vsyncadd [#allocation5], %s58
      %s61 = sshll.u32 [#allocation6], 4
      %s62 = int_to_ptr.vmem [resolvable:$true] %s61
      %64 = dma.hbm_to_vmem [thread:$0]  %s9, 16, %s62, [#allocation5]
    $region41: #{cnn_forward.1} parent=1 // pred_fallthru
      _
    // Predicated region
    $region42: #{cnn_forward.1} parent=1 // pred_check
      _
    $region43: #{cnn_forward.1} parent=1 // pred_check_branch
      %66 = sbr.rel (0) target = $region45
    $region44: #{cnn_forward.1} parent=1 // pred_region
      %s68 = ssub.s32 16, 16
      %69 = vsyncadd [#allocation8], %s68
      %s71 = sshll.u32 [#allocation7], 4
      %s72 = int_to_ptr.vmem [resolvable:$true] %s71
      %74 = dma.hbm_to_vmem [thread:$0]  %s10, 16, %s72, [#allocation8]
    $region45: #{cnn_forward.1} parent=1 // pred_fallthru
      _
    // Predicated region
    $region46: #{cnn_forward.1} parent=1 // pred_check
      _
    $region47: #{cnn_forward.1} parent=1 // pred_check_branch
      %76 = sbr.rel (0) target = $region49
    $region48: #{cnn_forward.1} parent=1 // pred_region
      _
    $region49: #{cnn_forward.1} parent=1 // pred_fallthru
      _
    // Predicated region
    $region50: #{cnn_forward.1} parent=1 // pred_check
      _
    $region51: #{cnn_forward.1} parent=1 // pred_check_branch
      %78 = sbr.rel (0) target = $region53
    $region52: #{cnn_forward.1} parent=1 // pred_region
      %s80 = ssub.s32 16, 16
      %81 = vsyncadd [#allocation8], %s80
      %s83 = sshll.u32 [#allocation9], 4
      %s84 = int_to_ptr.vmem [resolvable:$true] %s83
      %86 = dma.hbm_to_vmem [thread:$0]  %s12, 16, %s84, [#allocation8]
    $region53: #{cnn_forward.1} parent=1 // pred_fallthru
      _
    // Predicated region
    $region54: #{cnn_forward.1} parent=1 // pred_check
      _
    $region55: #{cnn_forward.1} parent=1 // pred_check_branch
      %88 = sbr.rel (0) target = $region57
    $region56: #{cnn_forward.1} parent=1 // pred_region
      %89 = dma.done [#allocation3], 16
    $region57: #{cnn_forward.1} parent=1 // pred_fallthru
      _
    // Predicated region
    $region58: #{cnn_forward.1} parent=1 // pred_check
      _
    $region59: #{cnn_forward.1} parent=1 // pred_check_branch
      %91 = sbr.rel (0) target = $region61
    $region60: #{cnn_forward.1} parent=1 // pred_region
      %92 = dma.done [#allocation5], 16
    $region61: #{cnn_forward.1} parent=1 // pred_fallthru
      _
    // Predicated region
    $region62: #{cnn_forward.1} parent=1 // pred_check
      _
    $region63: #{cnn_forward.1} parent=1 // pred_check_branch
      %94 = sbr.rel (0) target = $region65
    $region64: #{cnn_forward.1} parent=1 // pred_region
      %95 = dma.done [#allocation5], 16
    $region65: #{cnn_forward.1} parent=1 // pred_fallthru
      _
    // Predicated region
    $region66: #{cnn_forward.1} parent=1 // pred_check
      _
    $region67: #{cnn_forward.1} parent=1 // pred_check_branch
      %97 = sbr.rel (0) target = $region69
    $region68: #{cnn_forward.1} parent=1 // pred_region
      %98 = dma.done [#allocation8], 16
    $region69: #{cnn_forward.1} parent=1 // pred_fallthru
      _
    // Predicated region
    $region70: #{cnn_forward.1} parent=1 // pred_check
      _
    $region71: #{cnn_forward.1} parent=1 // pred_check_branch
      %100 = sbr.rel (0) target = $region73
    $region72: #{cnn_forward.1} parent=1 // pred_region
      %101 = dma.done [#allocation8], 16
    $region73: #{cnn_forward.1} parent=1 // pred_fallthru
      _
    %v103 = vld [vmem:[%s0] sm:$0xff]
    %v104 = vld [vmem:[%s0 + $0x8] sm:$0xff]
    %v105 = vld [vmem:[%s0 + $0x10] sm:$0xff]
    %v106 = vld [vmem:[%s0 + $0x18] sm:$0xff]
    %v107 = vld [vmem:[%s0 + $0x20] sm:$0xff]
    %v108 = vld [vmem:[%s0 + $0x28] sm:$0xff]
    %v109 = vld [vmem:[%s0 + $0x30] sm:$0xff]
    %v110 = vpack.c.bf16 %v103, %v103
    %v111 = vpack.c.bf16 %v104, %v104
    %v112 = vpack.c.bf16 %v105, %v105
    %v113 = vpack.c.bf16 %v106, %v106
    %v114 = vpack.c.bf16 %v107, %v107
    %v115 = vpack.c.bf16 %v108, %v108
    %v116 = vpack.c.bf16 %v109, %v109
    %v117 = vld [vmem:[%s1] sm:$0xf]
    %v118 = vld [vmem:[%s1 + $0x4] sm:$0xf]
    %v119 = vld [vmem:[%s1 + $0x8] sm:$0xf]
    %v120 = vld [vmem:[%s1 + $0xc] sm:$0xf]
    %v121 = vld [vmem:[%s1 + $0x10] sm:$0xf]
    %v122 = vld [vmem:[%s1 + $0x14] sm:$0xf]
    %v123 = vld [vmem:[%s1 + $0x18] sm:$0xf]
    %v124 = vld [vmem:[%s1 + $0x1c] sm:$0xf]
    %v125 = vld [vmem:[%s1 + $0x20] sm:$0xf]
    %v126 = vld [vmem:[%s1 + $0x24] sm:$0xf]
    %v127 = vld [vmem:[%s1 + $0x28] sm:$0xf]
    %v128 = vld [vmem:[%s1 + $0x2c] sm:$0xf]
    %v129 = vld [vmem:[%s1 + $0x30] sm:$0xf]
    %v130 = vld [vmem:[%s1 + $0x34] sm:$0xf]
    %v131 = vld [vmem:[%s1 + $0x38] sm:$0xf]
    %v132 = vld [vmem:[%s1 + $0x3c] sm:$0xf]
    %v133 = vld [vmem:[%s1 + $0x40] sm:$0xf]
    %v134 = vld [vmem:[%s1 + $0x44] sm:$0xf]
    %v135 = vld [vmem:[%s1 + $0x48] sm:$0xf]
    %v136 = vld [vmem:[%s1 + $0x4c] sm:$0xf]
    %v137 = vld [vmem:[%s1 + $0x50] sm:$0xf]
    %v138 = vld [vmem:[%s1 + $0x54] sm:$0xf]
    %v139 = vld [vmem:[%s1 + $0x58] sm:$0xf]
    %v140 = vld [vmem:[%s1 + $0x5c] sm:$0xf]
    %v141 = vld [vmem:[%s1 + $0x60] sm:$0xf]
    %v142 = vld [vmem:[%s1 + $0x64] sm:$0xf]
    %v143 = vld [vmem:[%s1 + $0x68] sm:$0xf]
    %v144 = vld [vmem:[%s1 + $0x6c] sm:$0xf]
    %v145 = vld [vmem:[%s1 + $0x70] sm:$0xf]
    %v146 = vld [vmem:[%s1 + $0x74] sm:$0xf]
    %v147 = vld [vmem:[%s1 + $0x78] sm:$0xf]
    %v148 = vld [vmem:[%s1 + $0x7c] sm:$0xf]
    %v149 = vld [vmem:[%s1 + $0x80] sm:$0xf]
    %v150 = vld [vmem:[%s1 + $0x84] sm:$0xf]
    %v151 = vld [vmem:[%s1 + $0x88] sm:$0xf]
    %v152 = vld [vmem:[%s1 + $0x8c] sm:$0xf]
    %v153 = vld [vmem:[%s1 + $0x90] sm:$0xf]
    %v154 = vld [vmem:[%s1 + $0x94] sm:$0xf]
    %v155 = vld [vmem:[%s1 + $0x98] sm:$0xf]
    %v156 = vld [vmem:[%s1 + $0x9c] sm:$0xf]
    %v157 = vld [vmem:[%s1 + $0xa0] sm:$0xf]
    %v158 = vld [vmem:[%s1 + $0xa4] sm:$0xf]
    %v159 = vld [vmem:[%s1 + $0xa8] sm:$0xf]
    %v160 = vld [vmem:[%s1 + $0xac] sm:$0xf]
    %v161 = vld [vmem:[%s1 + $0xb0] sm:$0xf]
    %v162 = vld [vmem:[%s1 + $0xb4] sm:$0xf]
    %v163 = vld [vmem:[%s1 + $0xb8] sm:$0xf]
    %v164 = vld [vmem:[%s1 + $0xbc] sm:$0xf]
    %v165 = vld [vmem:[%s1 + $0xc0] sm:$0xf]
    %v166 = vld [vmem:[%s1 + $0xc4] sm:$0xf]
    %v167 = vld [vmem:[%s1 + $0xc8] sm:$0xf]
    %v168 = vld [vmem:[%s1 + $0xcc] sm:$0xf]
    %v169 = vld [vmem:[%s1 + $0xd0] sm:$0xf]
    %v170 = vld [vmem:[%s1 + $0xd4] sm:$0xf]
    %v171 = vld [vmem:[%s1 + $0xd8] sm:$0xf]
    %v172 = vld [vmem:[%s1 + $0xdc] sm:$0xf]
    %v173 = vld [vmem:[%s1 + $0xe0] sm:$0xf]
    %v174 = vld [vmem:[%s1 + $0xe4] sm:$0xf]
    %v175 = vld [vmem:[%s1 + $0xe8] sm:$0xf]
    %v176 = vld [vmem:[%s1 + $0xec] sm:$0xf]
    %v177 = vld [vmem:[%s1 + $0xf0] sm:$0xf]
    %v178 = vld [vmem:[%s1 + $0xf4] sm:$0xf]
    %v179 = vld [vmem:[%s1 + $0xf8] sm:$0xf]
    %v180 = vld [vmem:[%s1 + $0xfc] sm:$0xf]
    %v181 = vld [vmem:[%s1 + $0x100] sm:$0xf]
    %v182 = vld [vmem:[%s1 + $0x104] sm:$0xf]
    %v183 = vld [vmem:[%s1 + $0x108] sm:$0xf]
    %v184 = vld [vmem:[%s1 + $0x10c] sm:$0xf]
    %v185 = vld [vmem:[%s1 + $0x110] sm:$0xf]
    %v186 = vld [vmem:[%s1 + $0x114] sm:$0xf]
    %v187 = vld [vmem:[%s1 + $0x118] sm:$0xf]
    %v188 = vld [vmem:[%s1 + $0x11c] sm:$0xf]
    %v189 = vld [vmem:[%s1 + $0x120] sm:$0xf]
    %v190 = vld [vmem:[%s1 + $0x124] sm:$0xf]
    %v191 = vld [vmem:[%s1 + $0x128] sm:$0xf]
    %v192 = vld [vmem:[%s1 + $0x12c] sm:$0xf]
    %v193 = vld [vmem:[%s1 + $0x130] sm:$0xf]
    %v194 = vld [vmem:[%s1 + $0x134] sm:$0xf]
    %v195 = vld [vmem:[%s1 + $0x138] sm:$0xf]
    %v196 = vld [vmem:[%s1 + $0x13c] sm:$0xf]
    %v197 = vld [vmem:[%s1 + $0x140] sm:$0xf]
    %v198 = vld [vmem:[%s1 + $0x144] sm:$0xf]
    %v199 = vld [vmem:[%s1 + $0x148] sm:$0xf]
    %v200 = vld [vmem:[%s1 + $0x14c] sm:$0xf]
    %v201 = vld [vmem:[%s1 + $0x150] sm:$0xf]
    %v202 = vld [vmem:[%s1 + $0x154] sm:$0xf]
    %v203 = vld [vmem:[%s1 + $0x158] sm:$0xf]
    %v204 = vld [vmem:[%s1 + $0x15c] sm:$0xf]
    %v205 = vld [vmem:[%s1 + $0x160] sm:$0xf]
    %v206 = vld [vmem:[%s1 + $0x164] sm:$0xf]
    %v207 = vld [vmem:[%s1 + $0x168] sm:$0xf]
    %v208 = vld [vmem:[%s1 + $0x16c] sm:$0xf]
    %v209 = vld [vmem:[%s1 + $0x170] sm:$0xf]
    %v210 = vld [vmem:[%s1 + $0x174] sm:$0xf]
    %v211 = vld [vmem:[%s1 + $0x178] sm:$0xf]
    %v212 = vld [vmem:[%s1 + $0x17c] sm:$0xf]
    %v213 = vld [vmem:[%s1 + $0x180] sm:$0xf]
    %v214 = vld [vmem:[%s1 + $0x184] sm:$0xf]
    %v215 = vld [vmem:[%s2] sm:$0x1]
    %v217 = vlaneseq
    %v218 = vshrl.u32 %v217, 7
    %v219 = vsub.s32 0, %v218
    %v220 = vrot.slane %v215, %v219
    %v320 = vunpack.c.l.b16 %v117
    %v321 = vunpack.c.l.b16 %v118
    %v322 = vunpack.c.l.b16 %v119
    %v323 = vunpack.c.l.b16 %v120
    %v324 = vunpack.c.l.b16 %v121
    %v325 = vunpack.c.l.b16 %v122
    %v326 = vunpack.c.l.b16 %v123
    %v327 = vunpack.c.l.b16 %v124
    %v328 = vunpack.c.l.b16 %v125
    %v329 = vunpack.c.l.b16 %v126
    %v330 = vunpack.c.l.b16 %v127
    %v331 = vunpack.c.l.b16 %v128
    %v332 = vunpack.c.l.b16 %v129
    %v333 = vunpack.c.l.b16 %v130
    %v334 = vunpack.c.l.b16 %v131
    %v335 = vunpack.c.l.b16 %v132
    %v336 = vunpack.c.l.b16 %v133
    %v337 = vunpack.c.l.b16 %v134
    %v338 = vunpack.c.l.b16 %v135
    %v339 = vunpack.c.l.b16 %v136
    %v340 = vunpack.c.l.b16 %v137
    %v341 = vunpack.c.l.b16 %v138
    %v342 = vunpack.c.l.b16 %v139
    %v343 = vunpack.c.l.b16 %v140
    %v344 = vunpack.c.l.b16 %v141
    %v345 = vunpack.c.l.b16 %v142
    %v346 = vunpack.c.l.b16 %v143
    %v347 = vunpack.c.l.b16 %v144
    %v348 = vunpack.c.l.b16 %v145
    %v349 = vunpack.c.l.b16 %v146
    %v350 = vunpack.c.l.b16 %v147
    %v351 = vunpack.c.l.b16 %v148
    %v352 = vunpack.c.l.b16 %v149
    %v353 = vunpack.c.l.b16 %v150
    %v354 = vunpack.c.l.b16 %v151
    %v355 = vunpack.c.l.b16 %v152
    %v356 = vunpack.c.l.b16 %v153
    %v357 = vunpack.c.l.b16 %v154
    %v358 = vunpack.c.l.b16 %v155
    %v359 = vunpack.c.l.b16 %v156
    %v360 = vunpack.c.l.b16 %v157
    %v361 = vunpack.c.l.b16 %v158
    %v362 = vunpack.c.l.b16 %v159
    %v363 = vunpack.c.l.b16 %v160
    %v364 = vunpack.c.l.b16 %v161
    %v365 = vunpack.c.l.b16 %v162
    %v366 = vunpack.c.l.b16 %v163
    %v367 = vunpack.c.l.b16 %v164
    %v368 = vunpack.c.l.b16 %v165
    %v369 = vunpack.c.l.b16 %v166
    %v370 = vunpack.c.l.b16 %v167
    %v371 = vunpack.c.l.b16 %v168
    %v372 = vunpack.c.l.b16 %v169
    %v373 = vunpack.c.l.b16 %v170
    %v374 = vunpack.c.l.b16 %v171
    %v375 = vunpack.c.l.b16 %v172
    %v376 = vunpack.c.l.b16 %v173
    %v377 = vunpack.c.l.b16 %v174
    %v378 = vunpack.c.l.b16 %v175
    %v379 = vunpack.c.l.b16 %v176
    %v380 = vunpack.c.l.b16 %v177
    %v381 = vunpack.c.l.b16 %v178
    %v382 = vunpack.c.l.b16 %v179
    %v383 = vunpack.c.l.b16 %v180
    %v384 = vunpack.c.l.b16 %v181
    %v385 = vunpack.c.l.b16 %v182
    %v386 = vunpack.c.l.b16 %v183
    %v387 = vunpack.c.l.b16 %v184
    %v388 = vunpack.c.l.b16 %v185
    %v389 = vunpack.c.l.b16 %v186
    %v390 = vunpack.c.l.b16 %v187
    %v391 = vunpack.c.l.b16 %v188
    %v392 = vunpack.c.l.b16 %v189
    %v393 = vunpack.c.l.b16 %v190
    %v394 = vunpack.c.l.b16 %v191
    %v395 = vunpack.c.l.b16 %v192
    %v396 = vunpack.c.l.b16 %v193
    %v397 = vunpack.c.l.b16 %v194
    %v398 = vunpack.c.l.b16 %v195
    %v399 = vunpack.c.l.b16 %v196
    %v400 = vunpack.c.l.b16 %v197
    %v401 = vunpack.c.l.b16 %v198
    %v402 = vunpack.c.l.b16 %v199
    %v403 = vunpack.c.l.b16 %v200
    %v404 = vunpack.c.l.b16 %v201
    %v405 = vunpack.c.l.b16 %v202
    %v406 = vunpack.c.l.b16 %v203
    %v407 = vunpack.c.l.b16 %v204
    %v408 = vunpack.c.l.b16 %v205
    %v409 = vunpack.c.l.b16 %v206
    %v410 = vunpack.c.l.b16 %v207
    %v411 = vunpack.c.l.b16 %v208
    %v412 = vunpack.c.l.b16 %v209
    %v413 = vunpack.c.l.b16 %v210
    %v414 = vunpack.c.l.b16 %v211
    %v415 = vunpack.c.l.b16 %v212
    %v416 = vunpack.c.l.b16 %v213
    %v417 = vunpack.c.l.b16 %v214
    %v418 = vpack.c.b16 %v321, %v320
    %v419 = vpack.c.b16 %v323, %v322
    %v420 = vpack.c.b16 %v325, %v324
    %v421 = vpack.c.b16 %v327, %v326
    %v422 = vpack.c.b16 %v329, %v328
    %v423 = vpack.c.b16 %v331, %v330
    %v424 = vpack.c.b16 %v333, %v332
    %v425 = vpack.c.b16 %v335, %v334
    %v426 = vpack.c.b16 %v337, %v336
    %v427 = vpack.c.b16 %v339, %v338
    %v428 = vpack.c.b16 %v341, %v340
    %v429 = vpack.c.b16 %v343, %v342
    %v430 = vpack.c.b16 %v345, %v344
    %v431 = vpack.c.b16 %v347, %v346
    %v432 = vpack.c.b16 %v349, %v348
    %v433 = vpack.c.b16 %v351, %v350
    %v434 = vpack.c.b16 %v353, %v352
    %v435 = vpack.c.b16 %v355, %v354
    %v436 = vpack.c.b16 %v357, %v356
    %v437 = vpack.c.b16 %v359, %v358
    %v438 = vpack.c.b16 %v361, %v360
    %v439 = vpack.c.b16 %v363, %v362
    %v440 = vpack.c.b16 %v365, %v364
    %v441 = vpack.c.b16 %v367, %v366
    %v442 = vpack.c.b16 %v369, %v368
    %v443 = vpack.c.b16 %v371, %v370
    %v444 = vpack.c.b16 %v373, %v372
    %v445 = vpack.c.b16 %v375, %v374
    %v446 = vpack.c.b16 %v377, %v376
    %v447 = vpack.c.b16 %v379, %v378
    %v448 = vpack.c.b16 %v381, %v380
    %v449 = vpack.c.b16 %v383, %v382
    %v450 = vpack.c.b16 %v385, %v384
    %v451 = vpack.c.b16 %v387, %v386
    %v452 = vpack.c.b16 %v389, %v388
    %v453 = vpack.c.b16 %v391, %v390
    %v454 = vpack.c.b16 %v393, %v392
    %v455 = vpack.c.b16 %v395, %v394
    %v456 = vpack.c.b16 %v397, %v396
    %v457 = vpack.c.b16 %v399, %v398
    %v458 = vpack.c.b16 %v401, %v400
    %v459 = vpack.c.b16 %v403, %v402
    %v460 = vpack.c.b16 %v405, %v404
    %v461 = vpack.c.b16 %v407, %v406
    %v462 = vpack.c.b16 %v409, %v408
    %v463 = vpack.c.b16 %v411, %v410
    %v464 = vpack.c.b16 %v413, %v412
    %v465 = vpack.c.b16 %v415, %v414
    %v466 = vpack.c.b16 %v417, %v416
    %vm516 = vcmask 130048
    %v518 = vsel %vm516, %v116, 0
    %520 = vmatprep.subr.bf16.mxu0 0
    %521 = vmatpush1.bf16.msra.mxu0 %v418
    %522 = vmatprep.subr.bf16.mxu0 0
    %523 = vmatpush1.bf16.msra.mxu0 %v419
    %524 = vmatprep.subr.bf16.mxu0 0
    %525 = vmatpush1.bf16.msra.mxu0 %v420
    %526 = vmatprep.subr.bf16.mxu0 0
    %527 = vmatpush1.bf16.msra.mxu0 %v421
    %528 = vmatprep.subr.bf16.mxu0 0
    %529 = vmatpush1.bf16.msra.mxu0 %v422
    %530 = vmatprep.subr.bf16.mxu0 0
    %531 = vmatpush1.bf16.msra.mxu0 %v423
    %532 = vmatprep.subr.bf16.mxu0 0
    %533 = vmatpush1.bf16.msra.mxu0 %v424
    %534 = vmatprep.subr.bf16.mxu0 0
    %535 = vmatpush1.bf16.msra.mxu0 %v425
    %536 = vmatprep.subr.bf16.mxu0 0
    %537 = vmatpush1.bf16.msra.mxu0 %v426
    %538 = vmatprep.subr.bf16.mxu0 0
    %539 = vmatpush1.bf16.msra.mxu0 %v427
    %540 = vmatprep.subr.bf16.mxu0 0
    %541 = vmatpush1.bf16.msra.mxu0 %v428
    %542 = vmatprep.subr.bf16.mxu0 0
    %543 = vmatpush1.bf16.msra.mxu0 %v429
    %544 = vmatprep.subr.bf16.mxu0 0
    %545 = vmatpush1.bf16.msra.mxu0 %v430
    %546 = vmatprep.subr.bf16.mxu0 0
    %547 = vmatpush1.bf16.msra.mxu0 %v431
    %548 = vmatprep.subr.bf16.mxu0 0
    %549 = vmatpush1.bf16.msra.mxu0 %v432
    %550 = vmatprep.subr.bf16.mxu0 0
    %551 = vmatpush1.bf16.msra.mxu0 %v433
    %552 = vmatprep.mubr.bf16.mxu0 %v111
    %553 = vmatmul.mubr.bf16.gmra.mrb[0].mxu0 %v110
    %v554 = vpop.f32.mrb[0].mxu0
    %v555 = vadd.f32 %v220, %v554
    %v556 = vpop.f32.mrb[0].mxu0
    %v557 = vpop.f32.mrb[0].mxu0
    %v558 = vpop.f32.mrb[0].mxu0
    %559 = vdwg.mxu0
    %560 = vmatprep.subr.bf16.mxu0 0
    %561 = vmatpush1.bf16.msra.mxu0 %v434
    %562 = vmatprep.subr.bf16.mxu0 0
    %563 = vmatpush1.bf16.msra.mxu0 %v435
    %564 = vmatprep.subr.bf16.mxu0 0
    %565 = vmatpush1.bf16.msra.mxu0 %v436
    %566 = vmatprep.subr.bf16.mxu0 0
    %567 = vmatpush1.bf16.msra.mxu0 %v437
    %568 = vmatprep.subr.bf16.mxu0 0
    %569 = vmatpush1.bf16.msra.mxu0 %v438
    %570 = vmatprep.subr.bf16.mxu0 0
    %571 = vmatpush1.bf16.msra.mxu0 %v439
    %572 = vmatprep.subr.bf16.mxu0 0
    %573 = vmatpush1.bf16.msra.mxu0 %v440
    %574 = vmatprep.subr.bf16.mxu0 0
    %575 = vmatpush1.bf16.msra.mxu0 %v441
    %576 = vmatprep.subr.bf16.mxu0 0
    %577 = vmatpush1.bf16.msra.mxu0 %v442
    %578 = vmatprep.subr.bf16.mxu0 0
    %579 = vmatpush1.bf16.msra.mxu0 %v443
    %580 = vmatprep.subr.bf16.mxu0 0
    %581 = vmatpush1.bf16.msra.mxu0 %v444
    %582 = vmatprep.subr.bf16.mxu0 0
    %583 = vmatpush1.bf16.msra.mxu0 %v445
    %584 = vmatprep.subr.bf16.mxu0 0
    %585 = vmatpush1.bf16.msra.mxu0 %v446
    %586 = vmatprep.subr.bf16.mxu0 0
    %587 = vmatpush1.bf16.msra.mxu0 %v447
    %588 = vmatprep.subr.bf16.mxu0 0
    %589 = vmatpush1.bf16.msra.mxu0 %v448
    %590 = vmatprep.subr.bf16.mxu0 0
    %591 = vmatpush1.bf16.msra.mxu0 %v449
    %592 = vmatprep.mubr.bf16.mxu0 %v113
    %593 = vmatmul.mubr.bf16.gmra.mrb[0].mxu0 %v112
    %v594 = vpop.f32.mrb[0].mxu0
    %v595 = vadd.f32 %v555, %v594
    %v596 = vpop.f32.mrb[0].mxu0
    %v597 = vpop.f32.mrb[0].mxu0
    %v598 = vpop.f32.mrb[0].mxu0
    %599 = vdwg.mxu0
    %600 = vmatprep.subr.bf16.mxu0 0
    %601 = vmatpush1.bf16.msra.mxu0 %v450
    %602 = vmatprep.subr.bf16.mxu0 0
    %603 = vmatpush1.bf16.msra.mxu0 %v451
    %604 = vmatprep.subr.bf16.mxu0 0
    %605 = vmatpush1.bf16.msra.mxu0 %v452
    %606 = vmatprep.subr.bf16.mxu0 0
    %607 = vmatpush1.bf16.msra.mxu0 %v453
    %608 = vmatprep.subr.bf16.mxu0 0
    %609 = vmatpush1.bf16.msra.mxu0 %v454
    %610 = vmatprep.subr.bf16.mxu0 0
    %611 = vmatpush1.bf16.msra.mxu0 %v455
    %612 = vmatprep.subr.bf16.mxu0 0
    %613 = vmatpush1.bf16.msra.mxu0 %v456
    %614 = vmatprep.subr.bf16.mxu0 0
    %615 = vmatpush1.bf16.msra.mxu0 %v457
    %616 = vmatprep.subr.bf16.mxu0 0
    %617 = vmatpush1.bf16.msra.mxu0 %v458
    %618 = vmatprep.subr.bf16.mxu0 0
    %619 = vmatpush1.bf16.msra.mxu0 %v459
    %620 = vmatprep.subr.bf16.mxu0 0
    %621 = vmatpush1.bf16.msra.mxu0 %v460
    %622 = vmatprep.subr.bf16.mxu0 0
    %623 = vmatpush1.bf16.msra.mxu0 %v461
    %624 = vmatprep.subr.bf16.mxu0 0
    %625 = vmatpush1.bf16.msra.mxu0 %v462
    %626 = vmatprep.subr.bf16.mxu0 0
    %627 = vmatpush1.bf16.msra.mxu0 %v463
    %628 = vmatprep.subr.bf16.mxu0 0
    %629 = vmatpush1.bf16.msra.mxu0 %v464
    %630 = vmatprep.subr.bf16.mxu0 0
    %631 = vmatpush1.bf16.msra.mxu0 %v465
    %632 = vmatprep.mubr.bf16.mxu0 %v115
    %633 = vmatmul.mubr.bf16.gmra.mrb[0].mxu0 %v114
    %v634 = vpop.f32.mrb[0].mxu0
    %v635 = vadd.f32 %v595, %v634
    %v636 = vpop.f32.mrb[0].mxu0
    %v637 = vpop.f32.mrb[0].mxu0
    %v638 = vpop.f32.mrb[0].mxu0
    %639 = vdwg.mxu0
    %640 = vmatprep.subr.bf16.mxu0 0
    %641 = vmatpush1.bf16.msra.mxu0 %v466
    %642 = vmatprep.subr.bf16.mxu0 0
    %643 = vmatpush1.bf16.msra.mxu0 0
    %644 = vmatprep.subr.bf16.mxu0 0
    %645 = vmatpush1.bf16.msra.mxu0 0
    %646 = vmatprep.subr.bf16.mxu0 0
    %647 = vmatpush1.bf16.msra.mxu0 0
    %648 = vmatprep.subr.bf16.mxu0 0
    %649 = vmatpush1.bf16.msra.mxu0 0
    %650 = vmatprep.subr.bf16.mxu0 0
    %651 = vmatpush1.bf16.msra.mxu0 0
    %652 = vmatprep.subr.bf16.mxu0 0
    %653 = vmatpush1.bf16.msra.mxu0 0
    %654 = vmatprep.subr.bf16.mxu0 0
    %655 = vmatpush1.bf16.msra.mxu0 0
    %656 = vmatprep.subr.bf16.mxu0 0
    %657 = vmatpush1.bf16.msra.mxu0 0
    %658 = vmatprep.subr.bf16.mxu0 0
    %659 = vmatpush1.bf16.msra.mxu0 0
    %660 = vmatprep.subr.bf16.mxu0 0
    %661 = vmatpush1.bf16.msra.mxu0 0
    %662 = vmatprep.subr.bf16.mxu0 0
    %663 = vmatpush1.bf16.msra.mxu0 0
    %664 = vmatprep.subr.bf16.mxu0 0
    %665 = vmatpush1.bf16.msra.mxu0 0
    %666 = vmatprep.subr.bf16.mxu0 0
    %667 = vmatpush1.bf16.msra.mxu0 0
    %668 = vmatprep.subr.bf16.mxu0 0
    %669 = vmatpush1.bf16.msra.mxu0 0
    %670 = vmatprep.subr.bf16.mxu0 0
    %671 = vmatpush1.bf16.msra.mxu0 0
    %672 = vmatprep.mubr.bf16.mxu0 0
    %673 = vmatmul.mubr.bf16.gmra.mrb[0].mxu0 %v518
    %v674 = vpop.f32.mrb[0].mxu0
    %v675 = vadd.f32 %v635, %v674
    %v676 = vpop.f32.mrb[0].mxu0
    %v677 = vpop.f32.mrb[0].mxu0
    %v678 = vpop.f32.mrb[0].mxu0
    %679 = vdwg.mxu0
    %v680 = vld [vmem:[%s3] sm:$0xf]
    %v681 = vld [vmem:[%s3 + $0x4] sm:$0xf]
    %v682 = vld [vmem:[%s3 + $0x8] sm:$0xf]
    %v683 = vld [vmem:[%s3 + $0xc] sm:$0xf]
    %v684 = vld [vmem:[%s3 + $0x10] sm:$0xf]
    %v685 = vld [vmem:[%s3 + $0x14] sm:$0xf]
    %v686 = vld [vmem:[%s3 + $0x18] sm:$0xf]
    %v687 = vld [vmem:[%s3 + $0x1c] sm:$0xf]
    %v688 = vld [vmem:[%s3 + $0x20] sm:$0xf]
    %v689 = vld [vmem:[%s3 + $0x24] sm:$0xf]
    %v690 = vld [vmem:[%s3 + $0x28] sm:$0xf]
    %v691 = vld [vmem:[%s3 + $0x2c] sm:$0xf]
    %v692 = vld [vmem:[%s3 + $0x30] sm:$0xf]
    %v693 = vld [vmem:[%s3 + $0x34] sm:$0xf]
    %v694 = vld [vmem:[%s3 + $0x38] sm:$0xf]
    %v695 = vld [vmem:[%s3 + $0x3c] sm:$0xf]
    %v696 = vld [vmem:[%s4] sm:$0x1]
    %v697 = vld [vmem:[%s5] sm:$0x1]
    %v698 = vld [vmem:[#allocation2] sm:$0x1]
    %v699 = vpack.c.bf16 %v675, %v675
    %v701 = vlaneseq
    %v702 = vshrl.u32 %v701, 7
    %v703 = vsub.s32 0, %v702
    %v704 = vrot.slane %v696, %v703
    %v722 = vunpack.c.l.b16 %v680
    %v723 = vunpack.c.l.b16 %v681
    %v724 = vunpack.c.l.b16 %v682
    %v725 = vunpack.c.l.b16 %v683
    %v726 = vunpack.c.l.b16 %v684
    %v727 = vunpack.c.l.b16 %v685
    %v728 = vunpack.c.l.b16 %v686
    %v729 = vunpack.c.l.b16 %v687
    %v730 = vunpack.c.l.b16 %v688
    %v731 = vunpack.c.l.b16 %v689
    %v732 = vunpack.c.l.b16 %v690
    %v733 = vunpack.c.l.b16 %v691
    %v734 = vunpack.c.l.b16 %v692
    %v735 = vunpack.c.l.b16 %v693
    %v736 = vunpack.c.l.b16 %v694
    %v737 = vunpack.c.l.b16 %v695
    %v738 = vpack.c.b16 %v723, %v722
    %v739 = vpack.c.b16 %v725, %v724
    %v740 = vpack.c.b16 %v727, %v726
    %v741 = vpack.c.b16 %v729, %v728
    %v742 = vpack.c.b16 %v731, %v730
    %v743 = vpack.c.b16 %v733, %v732
    %v744 = vpack.c.b16 %v735, %v734
    %v745 = vpack.c.b16 %v737, %v736
    %754 = vmatprep.subr.bf16.mxu0 0
    %755 = vmatpush1.bf16.msra.mxu0 %v738
    %756 = vmatprep.subr.bf16.mxu0 0
    %757 = vmatpush1.bf16.msra.mxu0 %v739
    %758 = vmatprep.subr.bf16.mxu0 0
    %759 = vmatpush1.bf16.msra.mxu0 %v740
    %760 = vmatprep.subr.bf16.mxu0 0
    %761 = vmatpush1.bf16.msra.mxu0 %v741
    %762 = vmatprep.subr.bf16.mxu0 0
    %763 = vmatpush1.bf16.msra.mxu0 %v742
    %764 = vmatprep.subr.bf16.mxu0 0
    %765 = vmatpush1.bf16.msra.mxu0 %v743
    %766 = vmatprep.subr.bf16.mxu0 0
    %767 = vmatpush1.bf16.msra.mxu0 %v744
    %768 = vmatprep.subr.bf16.mxu0 0
    %769 = vmatpush1.bf16.msra.mxu0 %v745
    %770 = vmatprep.subr.bf16.mxu0 0
    %771 = vmatpush1.bf16.msra.mxu0 0
    %772 = vmatprep.subr.bf16.mxu0 0
    %773 = vmatpush1.bf16.msra.mxu0 0
    %774 = vmatprep.subr.bf16.mxu0 0
    %775 = vmatpush1.bf16.msra.mxu0 0
    %776 = vmatprep.subr.bf16.mxu0 0
    %777 = vmatpush1.bf16.msra.mxu0 0
    %778 = vmatprep.subr.bf16.mxu0 0
    %779 = vmatpush1.bf16.msra.mxu0 0
    %780 = vmatprep.subr.bf16.mxu0 0
    %781 = vmatpush1.bf16.msra.mxu0 0
    %782 = vmatprep.subr.bf16.mxu0 0
    %783 = vmatpush1.bf16.msra.mxu0 0
    %784 = vmatprep.subr.bf16.mxu0 0
    %785 = vmatpush1.bf16.msra.mxu0 0
    %786 = vmatprep.mubr.bf16.mxu0 0
    %787 = vmatmul.mubr.bf16.gmra.mrb[0].mxu0 %v699
    %v788 = vpop.f32.mrb[0].mxu0
    %v789 = vadd.f32 %v704, %v788
    %v790 = vpop.f32.mrb[0].mxu0
    %v791 = vpop.f32.mrb[0].mxu0
    %v792 = vpop.f32.mrb[0].mxu0
    %793 = vdwg.mxu0
    %vm794 = vcmask 523264
    %v795 = vsel %vm794, %v789, 0.0
    %796 = vadd.xlane.f32.xlu0 %v795
    %v797 = vpop.xlane.xlu0 %796
    %v798 = vmul.f32 %v797, 0.015625
    %v799 = vsub.f32 %v789, %v798
    %v800 = vmul.f32 %v799, %v799
    %v801 = vsel %vm794, %v800, 0.0
    %802 = vadd.xlane.f32.xlu0 %v801
    %v803 = vpop.xlane.xlu0 %802
    %v804 = vmul.f32 %v803, 0.015625
    %v805 = vadd.f32 %v804, 1e-05
    %v806 = vrsqrt.pop %v805
    %v807 = vmul.f32 %v799, %v806
    %v809 = vlaneseq
    %v810 = vshrl.u32 %v809, 7
    %v811 = vsub.s32 0, %v810
    %v812 = vrot.slane %v697, %v811
    %v814 = vmul.f32 %v807, %v812
    %v816 = vlaneseq
    %v817 = vshrl.u32 %v816, 7
    %v818 = vsub.s32 0, %v817
    %v819 = vrot.slane %v698, %v818
    %v821 = vadd.f32 %v814, %v819
    %v822 = vmax.f32 %v821, 0.0
    %v823 = vld [vmem:[%s7] sm:$0xf]
    %v824 = vld [vmem:[%s7 + $0x4] sm:$0xf]
    %v825 = vld [vmem:[%s7 + $0x8] sm:$0xf]
    %v826 = vld [vmem:[%s7 + $0xc] sm:$0xf]
    %v827 = vld [vmem:[%s7 + $0x10] sm:$0xf]
    %v828 = vld [vmem:[%s7 + $0x14] sm:$0xf]
    %v829 = vld [vmem:[%s7 + $0x18] sm:$0xf]
    %v830 = vld [vmem:[%s7 + $0x1c] sm:$0xf]
    %v831 = vld [vmem:[#allocation4] sm:$0x1]
    %v832 = vld [vmem:[#allocation6] sm:$0x1]
    %v833 = vld [vmem:[#allocation7] sm:$0x1]
    %v834 = vpack.c.bf16 %v822, %v822
    %v836 = vlaneseq
    %v837 = vshrl.u32 %v836, 7
    %v838 = vsub.s32 0, %v837
    %v839 = vrot.slane %v831, %v838
    %v849 = vunpack.c.l.b16 %v823
    %v850 = vunpack.c.l.b16 %v824
    %v851 = vunpack.c.l.b16 %v825
    %v852 = vunpack.c.l.b16 %v826
    %v853 = vunpack.c.l.b16 %v827
    %v854 = vunpack.c.l.b16 %v828
    %v855 = vunpack.c.l.b16 %v829
    %v856 = vunpack.c.l.b16 %v830
    %v857 = vpack.c.b16 %v850, %v849
    %v858 = vpack.c.b16 %v852, %v851
    %v859 = vpack.c.b16 %v854, %v853
    %v860 = vpack.c.b16 %v856, %v855
    %v866 = vsel %vm794, %v834, 0
    %868 = vmatprep.subr.bf16.mxu0 0
    %869 = vmatpush1.bf16.msra.mxu0 %v857
    %870 = vmatprep.subr.bf16.mxu0 0
    %871 = vmatpush1.bf16.msra.mxu0 %v858
    %872 = vmatprep.subr.bf16.mxu0 0
    %873 = vmatpush1.bf16.msra.mxu0 %v859
    %874 = vmatprep.subr.bf16.mxu0 0
    %875 = vmatpush1.bf16.msra.mxu0 %v860
    %876 = vmatprep.subr.bf16.mxu0 0
    %877 = vmatpush1.bf16.msra.mxu0 0
    %878 = vmatprep.subr.bf16.mxu0 0
    %879 = vmatpush1.bf16.msra.mxu0 0
    %880 = vmatprep.subr.bf16.mxu0 0
    %881 = vmatpush1.bf16.msra.mxu0 0
    %882 = vmatprep.subr.bf16.mxu0 0
    %883 = vmatpush1.bf16.msra.mxu0 0
    %884 = vmatprep.subr.bf16.mxu0 0
    %885 = vmatpush1.bf16.msra.mxu0 0
    %886 = vmatprep.subr.bf16.mxu0 0
    %887 = vmatpush1.bf16.msra.mxu0 0
    %888 = vmatprep.subr.bf16.mxu0 0
    %889 = vmatpush1.bf16.msra.mxu0 0
    %890 = vmatprep.subr.bf16.mxu0 0
    %891 = vmatpush1.bf16.msra.mxu0 0
    %892 = vmatprep.subr.bf16.mxu0 0
    %893 = vmatpush1.bf16.msra.mxu0 0
    %894 = vmatprep.subr.bf16.mxu0 0
    %895 = vmatpush1.bf16.msra.mxu0 0
    %896 = vmatprep.subr.bf16.mxu0 0
    %897 = vmatpush1.bf16.msra.mxu0 0
    %898 = vmatprep.subr.bf16.mxu0 0
    %899 = vmatpush1.bf16.msra.mxu0 0
    %900 = vmatprep.mubr.bf16.mxu0 0
    %901 = vmatmul.mubr.bf16.gmra.mrb[0].mxu0 %v866
    %v902 = vpop.f32.mrb[0].mxu0
    %v903 = vadd.f32 %v839, %v902
    %v904 = vpop.f32.mrb[0].mxu0
    %v905 = vpop.f32.mrb[0].mxu0
    %v906 = vpop.f32.mrb[0].mxu0
    %907 = vdwg.mxu0
    %vm908 = vcmask 261120
    %v909 = vsel %vm908, %v903, 0.0
    %910 = vadd.xlane.f32.xlu0 %v909
    %v911 = vpop.xlane.xlu0 %910
    %v912 = vmul.f32 %v911, 0.03125
    %v913 = vsub.f32 %v903, %v912
    %v914 = vmul.f32 %v913, %v913
    %v915 = vsel %vm908, %v914, 0.0
    %916 = vadd.xlane.f32.xlu0 %v915
    %v917 = vpop.xlane.xlu0 %916
    %v918 = vmul.f32 %v917, 0.03125
    %v919 = vadd.f32 %v918, 1e-05
    %v920 = vrsqrt.pop %v919
    %v921 = vmul.f32 %v913, %v920
    %v923 = vlaneseq
    %v924 = vshrl.u32 %v923, 7
    %v925 = vsub.s32 0, %v924
    %v926 = vrot.slane %v832, %v925
    %v928 = vmul.f32 %v921, %v926
    %v930 = vlaneseq
    %v931 = vshrl.u32 %v930, 7
    %v932 = vsub.s32 0, %v931
    %v933 = vrot.slane %v833, %v932
    %v935 = vadd.f32 %v928, %v933
    %v936 = vmax.f32 %v935, 0.0
    %v937 = vpack.c.bf16 %v936, %v936
    %v938 = vld [vmem:[%s11] sm:$0xf]
    %v939 = vld [vmem:[%s11 + $0x4] sm:$0xf]
    %v940 = vld [vmem:[%s11 + $0x8] sm:$0xf]
    %v941 = vld [vmem:[%s11 + $0xc] sm:$0xf]
    %v942 = vld [vmem:[#allocation9] sm:$0x1]
    %v944 = vlaneseq
    %v945 = vshrl.u32 %v944, 7
    %v946 = vsub.s32 0, %v945
    %v947 = vrot.slane %v942, %v946
    %v953 = vunpack.c.l.b16 %v938
    %v954 = vunpack.c.l.b16 %v939
    %v955 = vunpack.c.l.b16 %v940
    %v956 = vunpack.c.l.b16 %v941
    %v957 = vpack.c.b16 %v954, %v953
    %v958 = vpack.c.b16 %v956, %v955
    %v962 = vsel %vm908, %v937, 0
    %964 = vmatprep.subr.bf16.mxu0 0
    %965 = vmatpush1.bf16.msra.mxu0 %v957
    %966 = vmatprep.subr.bf16.mxu0 0
    %967 = vmatpush1.bf16.msra.mxu0 %v958
    %968 = vmatprep.subr.bf16.mxu0 0
    %969 = vmatpush1.bf16.msra.mxu0 0
    %970 = vmatprep.subr.bf16.mxu0 0
    %971 = vmatpush1.bf16.msra.mxu0 0
    %972 = vmatprep.subr.bf16.mxu0 0
    %973 = vmatpush1.bf16.msra.mxu0 0
    %974 = vmatprep.subr.bf16.mxu0 0
    %975 = vmatpush1.bf16.msra.mxu0 0
    %976 = vmatprep.subr.bf16.mxu0 0
    %977 = vmatpush1.bf16.msra.mxu0 0
    %978 = vmatprep.subr.bf16.mxu0 0
    %979 = vmatpush1.bf16.msra.mxu0 0
    %980 = vmatprep.subr.bf16.mxu0 0
    %981 = vmatpush1.bf16.msra.mxu0 0
    %982 = vmatprep.subr.bf16.mxu0 0
    %983 = vmatpush1.bf16.msra.mxu0 0
    %984 = vmatprep.subr.bf16.mxu0 0
    %985 = vmatpush1.bf16.msra.mxu0 0
    %986 = vmatprep.subr.bf16.mxu0 0
    %987 = vmatpush1.bf16.msra.mxu0 0
    %988 = vmatprep.subr.bf16.mxu0 0
    %989 = vmatpush1.bf16.msra.mxu0 0
    %990 = vmatprep.subr.bf16.mxu0 0
    %991 = vmatpush1.bf16.msra.mxu0 0
    %992 = vmatprep.subr.bf16.mxu0 0
    %993 = vmatpush1.bf16.msra.mxu0 0
    %994 = vmatprep.subr.bf16.mxu0 0
    %995 = vmatpush1.bf16.msra.mxu0 0
    %996 = vmatprep.mubr.bf16.mxu0 0
    %997 = vmatmul.mubr.bf16.gmra.mrb[0].mxu0 %v962
    %v998 = vpop.f32.mrb[0].mxu0
    %v999 = vadd.f32 %v947, %v998
    %v1000 = vpop.f32.mrb[0].mxu0
    %v1001 = vpop.f32.mrb[0].mxu0
    %v1002 = vpop.f32.mrb[0].mxu0
    %1003 = vdwg.mxu0
    %1004 = vst [vmem:[%s13] sm:$0xff] %v999
    // Predicated region
    $region74: #{cnn_forward.1} parent=1 // pred_check
      _
    $region75: #{cnn_forward.1} parent=1 // pred_check_branch
      %1006 = sbr.rel (0) target = $region77
    $region76: #{cnn_forward.1} parent=1 // pred_region
      _
    $region77: #{cnn_forward.1} parent=1 // pred_fallthru
      _
    // Predicated region
    $region78: #{cnn_forward.1} parent=1 // pred_check
      _
    $region79: #{cnn_forward.1} parent=1 // pred_check_branch
      %1008 = sbr.rel (0) target = $region81
    $region80: #{cnn_forward.1} parent=1 // pred_region
      _
    $region81: #{cnn_forward.1} parent=1 // pred_fallthru
      _
    %1009 = vsyncpa [#allocation3], 1
    %1010 = vsyncpa [#allocation5], 1
    %1011 = vsyncpa [#allocation8], 1

</llo_original>
